<compile_context>
chip_gen: v6e
topology: v6e:2x2x1
jax: 0.10.0
libtpu: 0.0.40
codegen_flags: <defaults>
</compile_context>

<pallas_src>
import math
from functools import partial

import jax
import jax.numpy as jnp
from jax.experimental import pallas as pl
from jax.experimental.pallas import tpu as pltpu

HIDDEN = 200        # logical hidden width (matches the PyTorch module)
HIDDEN_PAD = 256    # padded to 2 x 128 lanes


def _round_up(a, b):
    return -(-a // b) * b


def mlp_kernel(x_ref, w1_ref, b1_ref, w2_ref, b2_ref,
               w3_ref, b3_ref, w4_ref, b4_ref, o_ref):
    x = x_ref[...]                                           # [T, 1]

    # Layer 1 (1 -> 256): K=1 contraction == outer product -> VPU broadcast
    # multiply instead of a wasted MXU pass.
    h = x * w1_ref[...] + b1_ref[...]                        # [T, 256]

    # Layers 2 & 3 (256 -> 256): dense MXU matmuls, f32 accumulation.
    h = jnp.dot(h, w2_ref[...],
                preferred_element_type=jnp.float32) + b2_ref[...]
    h = jnp.dot(h, w3_ref[...],
                preferred_element_type=jnp.float32) + b3_ref[...]

    # Layer 4 (256 -> 1): 1-wide output -> elementwise mul + lane reduction
    # (XLU slot, free alongside the matmuls) instead of a degenerate matmul.
    y = jnp.sum(h * w4_ref[...], axis=-1, keepdims=True) + b4_ref[...]
    o_ref[...] = y.astype(o_ref.dtype)                       # [T, 1]


def prepare_params(params, hidden=HIDDEN, hidden_pad=HIDDEN_PAD):
    """Zero-pad the hidden dimension 200 -> 256 once, ahead of kernel calls.

    Padded hidden activations are exactly zero (zero weight columns + zero
    bias entries), and layer-4's padded weight entries are zero, so results
    are bit-for-bit equivalent math.
    """
    w1, b1, w2, b2, w3, b3, w4, b4 = params
    pc = hidden_pad - hidden
    w1p = jnp.pad(w1, ((0, 0), (0, pc)))        # (1, 256)
    b1p = jnp.pad(b1, ((0, 0), (0, pc)))        # (1, 256)
    w2p = jnp.pad(w2, ((0, pc), (0, pc)))       # (256, 256)
    b2p = jnp.pad(b2, ((0, 0), (0, pc)))        # (1, 256)
    w3p = jnp.pad(w3, ((0, pc), (0, pc)))       # (256, 256)
    b3p = jnp.pad(b3, ((0, 0), (0, pc)))        # (1, 256)
    w4p = jnp.pad(w4.T, ((0, 0), (0, pc)))      # (200,1) -> row (1, 256)
    b4p = b4.reshape(1, 1)                      # (1, 1)
    return w1p, b1p, w2p, b2p, w3p, b3p, w4p, b4p


@partial(jax.jit, static_argnames=("tile_n",))
def linear_regression_model_0(x, padded_params, *, tile_n=512):
    """x: [N, 1] float32 -> [N, 1] float32."""
    n = x.shape[0]

    # Batch tile: multiple of 8 sublanes, bounded so x/out stream with double
    # buffering and VMEM stays small on all generations.
    n8 = max(8, _round_up(n, 8))
    tile = min(tile_n, n8)
    n_pad = _round_up(n, tile)
    if n_pad != n:
        x = jnp.pad(x, ((0, n_pad - n), (0, 0)))
    grid = (n_pad // tile,)

    def full(shape):
        # whole-array resident block (weights / biases); constant index_map
        # means Pallas does not re-fetch it on later grid steps.
        return pl.BlockSpec(shape, lambda i: (0, 0))

    weight_bytes = sum(int(p.size) * p.dtype.itemsize for p in padded_params)
    cost = pl.CostEstimate(
        flops=n_pad * (4 * HIDDEN_PAD * HIDDEN_PAD + 4 * HIDDEN_PAD),
        transcendentals=0,
        bytes_accessed=weight_bytes + 2 * n_pad * 4,
    )

    out = pl.pallas_call(
        mlp_kernel,
        out_shape=jax.ShapeDtypeStruct((n_pad, 1), jnp.float32),
        grid=grid,
        in_specs=[
            pl.BlockSpec((tile, 1), lambda i: (i, 0)),   # x (streamed)
            full((1, HIDDEN_PAD)),                       # w1 (row)
            full((1, HIDDEN_PAD)),                       # b1
            full((HIDDEN_PAD, HIDDEN_PAD)),              # w2
            full((1, HIDDEN_PAD)),                       # b2
            full((HIDDEN_PAD, HIDDEN_PAD)),              # w3
            full((1, HIDDEN_PAD)),                       # b3
            full((1, HIDDEN_PAD)),                       # w4 (row)
            full((1, 1)),                                # b4
        ],
        out_specs=pl.BlockSpec((tile, 1), lambda i: (i, 0)),
        compiler_params=pltpu.CompilerParams(
            dimension_semantics=("parallel",)),
        cost_estimate=cost,
    )(x, *padded_params)

    return out[:n]


def init_linear(key, in_features, out_features):
    """Deterministic init matching torch.nn.Linear default:
    U(-1/sqrt(in_features), 1/sqrt(in_features)) for weight and bias.
    Weight returned as [in_features, out_features] (transposed vs PyTorch)."""
    kw, kb = jax.random.split(key)
    bound = 1.0 / math.sqrt(in_features)
    w = jax.random.uniform(kw, (in_features, out_features),
                           dtype=jnp.float32, minval=-bound, maxval=bound)
    b = jax.random.uniform(kb, (1, out_features),
                           dtype=jnp.float32, minval=-bound, maxval=bound)
    return w, b


if __name__ == "__main__":
    key = jax.random.PRNGKey(0)
    k_x, k1, k2, k3, k4 = jax.random.split(key, 5)

    w1, b1 = init_linear(k1, 1, HIDDEN)
    w2, b2 = init_linear(k2, HIDDEN, HIDDEN)
    w3, b3 = init_linear(k3, HIDDEN, HIDDEN)
    w4, b4 = init_linear(k4, HIDDEN, 1)
    params = (w1, b1, w2, b2, w3, b3, w4, b4)
    padded = prepare_params(params)

    def ref_forward(xx):
        h = xx
        for w, b in ((w1, b1), (w2, b2), (w3, b3), (w4, b4)):
            h = h @ w + b
        return h

    # n=8: single small tile (original workload); n=1000: multi-tile grid with
    # batch padding, exercising the streamed/pipelined path.
    for n in (8, 1000):
        x = jax.random.uniform(k_x, (n, 1), dtype=jnp.float32)
        out = jax.block_until_ready(linear_regression_model_0(x, padded))
        ref = ref_forward(x)
        assert out.shape == (n, 1)
        assert jnp.allclose(out, ref, atol=1e-4, rtol=1e-4), (
            f"mismatch at n={n}: max err {jnp.max(jnp.abs(out - ref))}")

    print("KERNEL_OK")
</pallas_src>

<mosaic_0001>
module attributes {stable_mosaic.version = 11 : i64} {
  func.func @mlp_kernel(%arg0: i32, %arg1: memref<8x1xf32, #tpu.memory_space<vmem>>, %arg2: memref<1x256xf32, #tpu.memory_space<vmem>>, %arg3: memref<1x256xf32, #tpu.memory_space<vmem>>, %arg4: memref<256x256xf32, #tpu.memory_space<vmem>>, %arg5: memref<1x256xf32, #tpu.memory_space<vmem>>, %arg6: memref<256x256xf32, #tpu.memory_space<vmem>>, %arg7: memref<1x256xf32, #tpu.memory_space<vmem>>, %arg8: memref<1x256xf32, #tpu.memory_space<vmem>>, %arg9: memref<1x1xf32, #tpu.memory_space<vmem>>, %arg10: memref<8x1xf32, #tpu.memory_space<vmem>>) attributes {dimension_semantics = [#tpu.dimension_semantics<parallel>], iteration_bounds = array<i64: 1>, scalar_prefetch = 0 : i64, scratch_operands = 0 : i64, tpu.core_type = #tpu.core_type<tc>, window_params = [{transform_indices = @transform_0, window_bounds = array<i64: 8, 1>}, {pipeline_mode = #tpu.pipeline_mode<synchronous>, transform_indices = @transform_1, window_bounds = array<i64: 1, 256>}, {pipeline_mode = #tpu.pipeline_mode<synchronous>, transform_indices = @transform_2, window_bounds = array<i64: 1, 256>}, {pipeline_mode = #tpu.pipeline_mode<synchronous>, transform_indices = @transform_3, window_bounds = array<i64: 256, 256>}, {pipeline_mode = #tpu.pipeline_mode<synchronous>, transform_indices = @transform_4, window_bounds = array<i64: 1, 256>}, {pipeline_mode = #tpu.pipeline_mode<synchronous>, transform_indices = @transform_5, window_bounds = array<i64: 256, 256>}, {pipeline_mode = #tpu.pipeline_mode<synchronous>, transform_indices = @transform_6, window_bounds = array<i64: 1, 256>}, {pipeline_mode = #tpu.pipeline_mode<synchronous>, transform_indices = @transform_7, window_bounds = array<i64: 1, 256>}, {pipeline_mode = #tpu.pipeline_mode<synchronous>, transform_indices = @transform_8, window_bounds = array<i64: 1, 1>}, {transform_indices = @transform_9, window_bounds = array<i64: 8, 1>}]} {
    %c0 = arith.constant 0 : index
    %c0_0 = arith.constant 0 : index
    %0 = vector.load %arg1[%c0, %c0_0] : memref<8x1xf32, #tpu.memory_space<vmem>>, vector<8x1xf32>
    %c0_1 = arith.constant 0 : index
    %c0_2 = arith.constant 0 : index
    %1 = vector.load %arg2[%c0_1, %c0_2] : memref<1x256xf32, #tpu.memory_space<vmem>>, vector<1x256xf32>
    %2 = vector.broadcast %0 : vector<8x1xf32> to vector<8x256xf32>
    %3 = vector.broadcast %1 : vector<1x256xf32> to vector<8x256xf32>
    %4 = arith.mulf %2, %3 : vector<8x256xf32>
    %c0_3 = arith.constant 0 : index
    %c0_4 = arith.constant 0 : index
    %5 = vector.load %arg3[%c0_3, %c0_4] : memref<1x256xf32, #tpu.memory_space<vmem>>, vector<1x256xf32>
    %6 = vector.broadcast %5 : vector<1x256xf32> to vector<8x256xf32>
    %7 = arith.addf %4, %6 : vector<8x256xf32>
    %c0_5 = arith.constant 0 : index
    %c0_6 = arith.constant 0 : index
    %8 = vector.load %arg4[%c0_5, %c0_6] : memref<256x256xf32, #tpu.memory_space<vmem>>, vector<256x256xf32>
    %cst = arith.constant dense<0.000000e+00> : vector<8x256xf32>
    %9 = tpu.matmul %7, %8, %cst {dimension_numbers = #tpu.dot_dimension_numbers<[1], [0], [0], [1], [0, 0, 1, 1], [], []>} : vector<8x256xf32>, vector<256x256xf32>, vector<8x256xf32> -> vector<8x256xf32>
    %c0_7 = arith.constant 0 : index
    %c0_8 = arith.constant 0 : index
    %10 = vector.load %arg5[%c0_7, %c0_8] : memref<1x256xf32, #tpu.memory_space<vmem>>, vector<1x256xf32>
    %11 = vector.broadcast %10 : vector<1x256xf32> to vector<8x256xf32>
    %12 = arith.addf %9, %11 : vector<8x256xf32>
    %c0_9 = arith.constant 0 : index
    %c0_10 = arith.constant 0 : index
    %13 = vector.load %arg6[%c0_9, %c0_10] : memref<256x256xf32, #tpu.memory_space<vmem>>, vector<256x256xf32>
    %cst_11 = arith.constant dense<0.000000e+00> : vector<8x256xf32>
    %14 = tpu.matmul %12, %13, %cst_11 {dimension_numbers = #tpu.dot_dimension_numbers<[1], [0], [0], [1], [0, 0, 1, 1], [], []>} : vector<8x256xf32>, vector<256x256xf32>, vector<8x256xf32> -> vector<8x256xf32>
    %c0_12 = arith.constant 0 : index
    %c0_13 = arith.constant 0 : index
    %15 = vector.load %arg7[%c0_12, %c0_13] : memref<1x256xf32, #tpu.memory_space<vmem>>, vector<1x256xf32>
    %16 = vector.broadcast %15 : vector<1x256xf32> to vector<8x256xf32>
    %17 = arith.addf %14, %16 : vector<8x256xf32>
    %c0_14 = arith.constant 0 : index
    %c0_15 = arith.constant 0 : index
    %18 = vector.load %arg8[%c0_14, %c0_15] : memref<1x256xf32, #tpu.memory_space<vmem>>, vector<1x256xf32>
    %19 = vector.broadcast %18 : vector<1x256xf32> to vector<8x256xf32>
    %20 = arith.mulf %17, %19 : vector<8x256xf32>
    %cst_16 = arith.constant dense<0.000000e+00> : vector<8xf32>
    %21 = vector.multi_reduction <add>, %20, %cst_16 [1] : vector<8x256xf32> to vector<8xf32>
    %22 = vector.shape_cast %21 : vector<8xf32> to vector<8x1xf32>
    %c0_17 = arith.constant 0 : index
    %c0_18 = arith.constant 0 : index
    %23 = vector.load %arg9[%c0_17, %c0_18] : memref<1x1xf32, #tpu.memory_space<vmem>>, vector<1x1xf32>
    %24 = vector.broadcast %23 : vector<1x1xf32> to vector<8x1xf32>
    %25 = arith.addf %22, %24 : vector<8x1xf32>
    %c0_19 = arith.constant 0 : index
    %c0_20 = arith.constant 0 : index
    %26 = vector.load %arg10[%c0_19, %c0_20] : memref<8x1xf32, #tpu.memory_space<vmem>>, vector<8x1xf32>
    tpu.vector_store %arg10[%c0_19, %c0_20], %25 {strides = array<i32>} : memref<8x1xf32, #tpu.memory_space<vmem>>, vector<8x1xf32>,
    return
  }
  func.func @transform_0(%arg0: i32) -> (i32, i32) {
    %c0_i32 = arith.constant 0 : i32
    %c0_i32_0 = arith.constant 0 : i32
    return %arg0, %c0_i32 : i32, i32
  }
  func.func @transform_1(%arg0: i32) -> (i32, i32) {
    %c0_i32 = arith.constant 0 : i32
    %c0_i32_0 = arith.constant 0 : i32
    %c0_i32_1 = arith.constant 0 : i32
    return %c0_i32, %c0_i32_0 : i32, i32
  }
  func.func @transform_2(%arg0: i32) -> (i32, i32) {
    %c0_i32 = arith.constant 0 : i32
    %c0_i32_0 = arith.constant 0 : i32
    %c0_i32_1 = arith.constant 0 : i32
    return %c0_i32, %c0_i32_0 : i32, i32
  }
  func.func @transform_3(%arg0: i32) -> (i32, i32) {
    %c0_i32 = arith.constant 0 : i32
    %c0_i32_0 = arith.constant 0 : i32
    %c0_i32_1 = arith.constant 0 : i32
    return %c0_i32, %c0_i32_0 : i32, i32
  }
  func.func @transform_4(%arg0: i32) -> (i32, i32) {
    %c0_i32 = arith.constant 0 : i32
    %c0_i32_0 = arith.constant 0 : i32
    %c0_i32_1 = arith.constant 0 : i32
    return %c0_i32, %c0_i32_0 : i32, i32
  }
  func.func @transform_5(%arg0: i32) -> (i32, i32) {
    %c0_i32 = arith.constant 0 : i32
    %c0_i32_0 = arith.constant 0 : i32
    %c0_i32_1 = arith.constant 0 : i32
    return %c0_i32, %c0_i32_0 : i32, i32
  }
  func.func @transform_6(%arg0: i32) -> (i32, i32) {
    %c0_i32 = arith.constant 0 : i32
    %c0_i32_0 = arith.constant 0 : i32
    %c0_i32_1 = arith.constant 0 : i32
    return %c0_i32, %c0_i32_0 : i32, i32
  }
  func.func @transform_7(%arg0: i32) -> (i32, i32) {
    %c0_i32 = arith.constant 0 : i32
    %c0_i32_0 = arith.constant 0 : i32
    %c0_i32_1 = arith.constant 0 : i32
    return %c0_i32, %c0_i32_0 : i32, i32
  }
  func.func @transform_8(%arg0: i32) -> (i32, i32) {
    %c0_i32 = arith.constant 0 : i32
    %c0_i32_0 = arith.constant 0 : i32
    %c0_i32_1 = arith.constant 0 : i32
    return %c0_i32, %c0_i32_0 : i32, i32
  }
  func.func @transform_9(%arg0: i32) -> (i32, i32) {
    %c0_i32 = arith.constant 0 : i32
    %c0_i32_0 = arith.constant 0 : i32
    return %arg0, %c0_i32 : i32, i32
  }
}

</mosaic_0001>

<llo_original>
// kernel: linear_regression_model_0.1
$region0: #{linear_regression_model_0.1}
  #allocation0 [shape = 'u32[]', space=smem, size = 0x4, offset = 0x4, fixed_abs, tag = 'smem constant byte address 0x4 - core index']
  #allocation1 [shape = 'u32[144,128]{1,0:T(1,128)}', space=vmem, size = 0x12000, scoped, tag = 'internal scratch']
  #allocation2 [shape = 'f32[1,1]{1,0:T(1,128)S(1)}', space=vmem, size = 0x200, scoped, tag = 'scoped memory for linear_regression_model_0.1']
  %s0 = inlined_call_operand.vmem [shape: f32[8,1], index: 0, kind: input, shape index: {}]
  %s1 = inlined_call_operand.vmem [shape: f32[1,256], index: 1, kind: input, shape index: {}]
  %s2 = inlined_call_operand.vmem [shape: f32[1,256], index: 2, kind: input, shape index: {}]
  %s3 = inlined_call_operand.hbm [shape: f32[256,256], index: 3, kind: input, shape index: {}]
  %s4 = inlined_call_operand.vmem [shape: f32[1,256], index: 4, kind: input, shape index: {}]
  %s5 = inlined_call_operand.hbm [shape: f32[256,256], index: 5, kind: input, shape index: {}]
  %s6 = inlined_call_operand.vmem [shape: f32[1,256], index: 6, kind: input, shape index: {}]
  %s7 = inlined_call_operand.vmem [shape: f32[1,256], index: 7, kind: input, shape index: {}]
  %s8 = inlined_call_operand.<no memory space> [shape: f32[1,1], index: 8, kind: input, shape index: {}]
  %s9 = inlined_call_operand.vmem [shape: f32[8,1], index: 9, kind: output, shape index: {}]
  %s10 = sld [smem:[#allocation0]]
  $region54: #{linear_regression_model_0.1} parent=0
    _
  %s12 = ssub.s32 1, %s10
  %s13 = scalar_select 0, %s12, %s10
  %v14 = vstv %s8
  %15 = vst [vmem:[#allocation2] sm:$0x1] %v14
  $region1: #{linear_regression_model_0.1} parent=0
    #allocation3 [shape = 'u8[262144]{0}', space=vmem, size = 0x40000, scoped, tag = 'input window, operand 3, single buffered']
    #allocation4 [shape = 's32[1]{0}', space=sflag, size = 0x4, scoped, tag = 'scoped memory for linear_regression_model_0.1']
    #allocation5 [shape = 'u8[262144]{0}', space=vmem, size = 0x40000, scoped, tag = 'input window, operand 5, single buffered']
    #allocation6 [shape = 's32[1]{0}', space=sflag, size = 0x4, scoped, tag = 'scoped memory for linear_regression_model_0.1']
    %16 = vsyncpa [#allocation4], 0
    %17 = vsyncpa [#allocation6], 0
    // Predicated region
    $region2: #{linear_regression_model_0.1} parent=1 // pred_check
      _
    $region3: #{linear_regression_model_0.1} parent=1 // pred_check_branch
      %19 = sbr.rel (0) target = $region5
    $region4: #{linear_regression_model_0.1} parent=1 // pred_region
      _
    $region5: #{linear_regression_model_0.1} parent=1 // pred_fallthru
      _
    // Predicated region
    $region6: #{linear_regression_model_0.1} parent=1 // pred_check
      _
    $region7: #{linear_regression_model_0.1} parent=1 // pred_check_branch
      %21 = sbr.rel (0) target = $region9
    $region8: #{linear_regression_model_0.1} parent=1 // pred_region
      _
    $region9: #{linear_regression_model_0.1} parent=1 // pred_fallthru
      _
    // Predicated region
    $region10: #{linear_regression_model_0.1} parent=1 // pred_check
      _
    $region11: #{linear_regression_model_0.1} parent=1 // pred_check_branch
      %23 = sbr.rel (0) target = $region13
    $region12: #{linear_regression_model_0.1} parent=1 // pred_region
      _
    $region13: #{linear_regression_model_0.1} parent=1 // pred_fallthru
      _
    // Predicated region
    $region14: #{linear_regression_model_0.1} parent=1 // pred_check
      _
    $region15: #{linear_regression_model_0.1} parent=1 // pred_check_branch
      %25 = sbr.rel (0) target = $region17
    $region16: #{linear_regression_model_0.1} parent=1 // pred_region
      %s27 = ssub.s32 8192, 8192
      %28 = vsyncadd [#allocation4], %s27
      %s29 = sshll.u32 [#allocation3], 4
      %s30 = int_to_ptr.vmem [resolvable:$true] %s29
      %35 = dma.hbm_to_vmem [thread:$0]  %s3, 8192, %s30, [#allocation4], 256, 256, 16
    $region17: #{linear_regression_model_0.1} parent=1 // pred_fallthru
      _
    // Predicated region
    $region18: #{linear_regression_model_0.1} parent=1 // pred_check
      _
    $region19: #{linear_regression_model_0.1} parent=1 // pred_check_branch
      %37 = sbr.rel (0) target = $region21
    $region20: #{linear_regression_model_0.1} parent=1 // pred_region
      _
    $region21: #{linear_regression_model_0.1} parent=1 // pred_fallthru
      _
    // Predicated region
    $region22: #{linear_regression_model_0.1} parent=1 // pred_check
      _
    $region23: #{linear_regression_model_0.1} parent=1 // pred_check_branch
      %39 = sbr.rel (0) target = $region25
    $region24: #{linear_regression_model_0.1} parent=1 // pred_region
      %s41 = ssub.s32 8192, 8192
      %42 = vsyncadd [#allocation6], %s41
      %s43 = sshll.u32 [#allocation5], 4
      %s44 = int_to_ptr.vmem [resolvable:$true] %s43
      %49 = dma.hbm_to_vmem [thread:$0]  %s5, 8192, %s44, [#allocation6], 256, 256, 16
    $region25: #{linear_regression_model_0.1} parent=1 // pred_fallthru
      _
    // Predicated region
    $region26: #{linear_regression_model_0.1} parent=1 // pred_check
      _
    $region27: #{linear_regression_model_0.1} parent=1 // pred_check_branch
      %51 = sbr.rel (0) target = $region29
    $region28: #{linear_regression_model_0.1} parent=1 // pred_region
      _
    $region29: #{linear_regression_model_0.1} parent=1 // pred_fallthru
      _
    // Predicated region
    $region30: #{linear_regression_model_0.1} parent=1 // pred_check
      _
    $region31: #{linear_regression_model_0.1} parent=1 // pred_check_branch
      %53 = sbr.rel (0) target = $region33
    $region32: #{linear_regression_model_0.1} parent=1 // pred_region
      _
    $region33: #{linear_regression_model_0.1} parent=1 // pred_fallthru
      _
    // Predicated region
    $region34: #{linear_regression_model_0.1} parent=1 // pred_check
      _
    $region35: #{linear_regression_model_0.1} parent=1 // pred_check_branch
      %55 = sbr.rel (0) target = $region37
    $region36: #{linear_regression_model_0.1} parent=1 // pred_region
      _
    $region37: #{linear_regression_model_0.1} parent=1 // pred_fallthru
      _
    // Predicated region
    $region38: #{linear_regression_model_0.1} parent=1 // pred_check
      _
    $region39: #{linear_regression_model_0.1} parent=1 // pred_check_branch
      %57 = sbr.rel (0) target = $region41
    $region40: #{linear_regression_model_0.1} parent=1 // pred_region
      %58 = dma.done [#allocation4], 8192
    $region41: #{linear_regression_model_0.1} parent=1 // pred_fallthru
      _
    // Predicated region
    $region42: #{linear_regression_model_0.1} parent=1 // pred_check
      _
    $region43: #{linear_regression_model_0.1} parent=1 // pred_check_branch
      %60 = sbr.rel (0) target = $region45
    $region44: #{linear_regression_model_0.1} parent=1 // pred_region
      %61 = dma.done [#allocation6], 8192
    $region45: #{linear_regression_model_0.1} parent=1 // pred_fallthru
      _
    %v62 = vld [vmem:[%s0] sm:$0xff]
    %v63 = vld [vmem:[%s1] sm:$0x3]
    %65 = vset.pattern.permute.xlu0 0
    %66 = vperm.xlu0 %65, %v62
    %v67 = vpop.permute.xlu0 %66
    %v70 = vlaneseq
    %v71 = vshrl.u32 %v70, 7
    %v72 = vsub.s32 0, %v71
    %v73 = vrot.slane %v63, %v72
    %v74 = vlaneseq
    %v75 = vshrl.u32 %v74, 7
    %v76 = vsub.s32 1, %v75
    %v77 = vrot.slane %v63, %v76
    %v80 = vmul.f32 %v67, %v73
    %v81 = vmul.f32 %v67, %v77
    %v82 = vld [vmem:[%s2] sm:$0x3]
    %v84 = vlaneseq
    %v85 = vshrl.u32 %v84, 7
    %v86 = vsub.s32 0, %v85
    %v87 = vrot.slane %v82, %v86
    %v88 = vlaneseq
    %v89 = vshrl.u32 %v88, 7
    %v90 = vsub.s32 1, %v89
    %v91 = vrot.slane %v82, %v90
    %v94 = vadd.f32 %v80, %v87
    %v95 = vadd.f32 %v81, %v91
    %v96 = vld [vmem:[#allocation3] sm:$0xff]
    %v97 = vld [vmem:[#allocation3 + $0x8] sm:$0xff]
    %v98 = vld [vmem:[#allocation3 + $0x10] sm:$0xff]
    %v99 = vld [vmem:[#allocation3 + $0x18] sm:$0xff]
    %v100 = vld [vmem:[#allocation3 + $0x20] sm:$0xff]
    %v101 = vld [vmem:[#allocation3 + $0x28] sm:$0xff]
    %v102 = vld [vmem:[#allocation3 + $0x30] sm:$0xff]
    %v103 = vld [vmem:[#allocation3 + $0x38] sm:$0xff]
    %v104 = vld [vmem:[#allocation3 + $0x40] sm:$0xff]
    %v105 = vld [vmem:[#allocation3 + $0x48] sm:$0xff]
    %v106 = vld [vmem:[#allocation3 + $0x50] sm:$0xff]
    %v107 = vld [vmem:[#allocation3 + $0x58] sm:$0xff]
    %v108 = vld [vmem:[#allocation3 + $0x60] sm:$0xff]
    %v109 = vld [vmem:[#allocation3 + $0x68] sm:$0xff]
    %v110 = vld [vmem:[#allocation3 + $0x70] sm:$0xff]
    %v111 = vld [vmem:[#allocation3 + $0x78] sm:$0xff]
    %v112 = vld [vmem:[#allocation3 + $0x80] sm:$0xff]
    %v113 = vld [vmem:[#allocation3 + $0x88] sm:$0xff]
    %v114 = vld [vmem:[#allocation3 + $0x90] sm:$0xff]
    %v115 = vld [vmem:[#allocation3 + $0x98] sm:$0xff]
    %v116 = vld [vmem:[#allocation3 + $0xa0] sm:$0xff]
    %v117 = vld [vmem:[#allocation3 + $0xa8] sm:$0xff]
    %v118 = vld [vmem:[#allocation3 + $0xb0] sm:$0xff]
    %v119 = vld [vmem:[#allocation3 + $0xb8] sm:$0xff]
    %v120 = vld [vmem:[#allocation3 + $0xc0] sm:$0xff]
    %v121 = vld [vmem:[#allocation3 + $0xc8] sm:$0xff]
    %v122 = vld [vmem:[#allocation3 + $0xd0] sm:$0xff]
    %v123 = vld [vmem:[#allocation3 + $0xd8] sm:$0xff]
    %v124 = vld [vmem:[#allocation3 + $0xe0] sm:$0xff]
    %v125 = vld [vmem:[#allocation3 + $0xe8] sm:$0xff]
    %v126 = vld [vmem:[#allocation3 + $0xf0] sm:$0xff]
    %v127 = vld [vmem:[#allocation3 + $0xf8] sm:$0xff]
    %v128 = vld [vmem:[#allocation3 + $0x100] sm:$0xff]
    %v129 = vld [vmem:[#allocation3 + $0x108] sm:$0xff]
    %v130 = vld [vmem:[#allocation3 + $0x110] sm:$0xff]
    %v131 = vld [vmem:[#allocation3 + $0x118] sm:$0xff]
    %v132 = vld [vmem:[#allocation3 + $0x120] sm:$0xff]
    %v133 = vld [vmem:[#allocation3 + $0x128] sm:$0xff]
    %v134 = vld [vmem:[#allocation3 + $0x130] sm:$0xff]
    %v135 = vld [vmem:[#allocation3 + $0x138] sm:$0xff]
    %v136 = vld [vmem:[#allocation3 + $0x140] sm:$0xff]
    %v137 = vld [vmem:[#allocation3 + $0x148] sm:$0xff]
    %v138 = vld [vmem:[#allocation3 + $0x150] sm:$0xff]
    %v139 = vld [vmem:[#allocation3 + $0x158] sm:$0xff]
    %v140 = vld [vmem:[#allocation3 + $0x160] sm:$0xff]
    %v141 = vld [vmem:[#allocation3 + $0x168] sm:$0xff]
    %v142 = vld [vmem:[#allocation3 + $0x170] sm:$0xff]
    %v143 = vld [vmem:[#allocation3 + $0x178] sm:$0xff]
    %v144 = vld [vmem:[#allocation3 + $0x180] sm:$0xff]
    %v145 = vld [vmem:[#allocation3 + $0x188] sm:$0xff]
    %v146 = vld [vmem:[#allocation3 + $0x190] sm:$0xff]
    %v147 = vld [vmem:[#allocation3 + $0x198] sm:$0xff]
    %v148 = vld [vmem:[#allocation3 + $0x1a0] sm:$0xff]
    %v149 = vld [vmem:[#allocation3 + $0x1a8] sm:$0xff]
    %v150 = vld [vmem:[#allocation3 + $0x1b0] sm:$0xff]
    %v151 = vld [vmem:[#allocation3 + $0x1b8] sm:$0xff]
    %v152 = vld [vmem:[#allocation3 + $0x1c0] sm:$0xff]
    %v153 = vld [vmem:[#allocation3 + $0x1c8] sm:$0xff]
    %v154 = vld [vmem:[#allocation3 + $0x1d0] sm:$0xff]
    %v155 = vld [vmem:[#allocation3 + $0x1d8] sm:$0xff]
    %v156 = vld [vmem:[#allocation3 + $0x1e0] sm:$0xff]
    %v157 = vld [vmem:[#allocation3 + $0x1e8] sm:$0xff]
    %v158 = vld [vmem:[#allocation3 + $0x1f0] sm:$0xff]
    %v159 = vld [vmem:[#allocation3 + $0x1f8] sm:$0xff]
    %v160 = vld [vmem:[%s4] sm:$0x3]
    %v162 = vlaneseq
    %v163 = vshrl.u32 %v162, 7
    %v164 = vsub.s32 0, %v163
    %v165 = vrot.slane %v160, %v164
    %v166 = vlaneseq
    %v167 = vshrl.u32 %v166, 7
    %v168 = vsub.s32 1, %v167
    %v169 = vrot.slane %v160, %v168
    %172 = vmatprep.subr.mxu0 %v127
    %173 = vmatpush1.msra.mxu0 %v126
    %174 = vmatprep.subr.mxu0 %v125
    %175 = vmatpush1.msra.mxu0 %v124
    %176 = vmatprep.subr.mxu0 %v123
    %177 = vmatpush1.msra.mxu0 %v122
    %178 = vmatprep.subr.mxu0 %v121
    %179 = vmatpush1.msra.mxu0 %v120
    %180 = vmatprep.subr.mxu0 %v119
    %181 = vmatpush1.msra.mxu0 %v118
    %182 = vmatprep.subr.mxu0 %v117
    %183 = vmatpush1.msra.mxu0 %v116
    %184 = vmatprep.subr.mxu0 %v115
    %185 = vmatpush1.msra.mxu0 %v114
    %186 = vmatprep.subr.mxu0 %v113
    %187 = vmatpush1.msra.mxu0 %v112
    %188 = vmatprep.subr.mxu0 %v111
    %189 = vmatpush1.msra.mxu0 %v110
    %190 = vmatprep.subr.mxu0 %v109
    %191 = vmatpush1.msra.mxu0 %v108
    %192 = vmatprep.subr.mxu0 %v107
    %193 = vmatpush1.msra.mxu0 %v106
    %194 = vmatprep.subr.mxu0 %v105
    %195 = vmatpush1.msra.mxu0 %v104
    %196 = vmatprep.subr.mxu0 %v103
    %197 = vmatpush1.msra.mxu0 %v102
    %198 = vmatprep.subr.mxu0 %v101
    %199 = vmatpush1.msra.mxu0 %v100
    %200 = vmatprep.subr.mxu0 %v99
    %201 = vmatpush1.msra.mxu0 %v98
    %202 = vmatprep.subr.mxu0 %v97
    %203 = vmatpush1.msra.mxu0 %v96
    %204 = vmatprep.subr.mxu0 %v159
    %205 = vmatpush2.msra.mxu0 %v158
    %206 = vmatprep.subr.mxu0 %v157
    %207 = vmatpush2.msra.mxu0 %v156
    %208 = vmatprep.subr.mxu0 %v155
    %209 = vmatpush2.msra.mxu0 %v154
    %210 = vmatprep.subr.mxu0 %v153
    %211 = vmatpush2.msra.mxu0 %v152
    %212 = vmatprep.subr.mxu0 %v151
    %213 = vmatpush2.msra.mxu0 %v150
    %214 = vmatprep.subr.mxu0 %v149
    %215 = vmatpush2.msra.mxu0 %v148
    %216 = vmatprep.subr.mxu0 %v147
    %217 = vmatpush2.msra.mxu0 %v146
    %218 = vmatprep.subr.mxu0 %v145
    %219 = vmatpush2.msra.mxu0 %v144
    %220 = vmatprep.subr.mxu0 %v143
    %221 = vmatpush2.msra.mxu0 %v142
    %222 = vmatprep.subr.mxu0 %v141
    %223 = vmatpush2.msra.mxu0 %v140
    %224 = vmatprep.subr.mxu0 %v139
    %225 = vmatpush2.msra.mxu0 %v138
    %226 = vmatprep.subr.mxu0 %v137
    %227 = vmatpush2.msra.mxu0 %v136
    %228 = vmatprep.subr.mxu0 %v135
    %229 = vmatpush2.msra.mxu0 %v134
    %230 = vmatprep.subr.mxu0 %v133
    %231 = vmatpush2.msra.mxu0 %v132
    %232 = vmatprep.subr.mxu0 %v131
    %233 = vmatpush2.msra.mxu0 %v130
    %234 = vmatprep.subr.mxu0 %v129
    %235 = vmatpush2.msra.mxu0 %v128
    %236 = vmatprep.mubr.f32.mxu0 %v95
    %237 = vmatmul.mubr.f32.gmra.mxu0 %v94
    %v238 = vpop.f32.mrf.mxu0
    %v239 = vadd.f32 %v165, %v238
    %v240 = vpop.f32.mrf.mxu0
    %v241 = vadd.f32 %v169, %v240
    %242 = vdwg.mxu0
    %v243 = vld [vmem:[#allocation5] sm:$0xff]
    %v244 = vld [vmem:[#allocation5 + $0x8] sm:$0xff]
    %v245 = vld [vmem:[#allocation5 + $0x10] sm:$0xff]
    %v246 = vld [vmem:[#allocation5 + $0x18] sm:$0xff]
    %v247 = vld [vmem:[#allocation5 + $0x20] sm:$0xff]
    %v248 = vld [vmem:[#allocation5 + $0x28] sm:$0xff]
    %v249 = vld [vmem:[#allocation5 + $0x30] sm:$0xff]
    %v250 = vld [vmem:[#allocation5 + $0x38] sm:$0xff]
    %v251 = vld [vmem:[#allocation5 + $0x40] sm:$0xff]
    %v252 = vld [vmem:[#allocation5 + $0x48] sm:$0xff]
    %v253 = vld [vmem:[#allocation5 + $0x50] sm:$0xff]
    %v254 = vld [vmem:[#allocation5 + $0x58] sm:$0xff]
    %v255 = vld [vmem:[#allocation5 + $0x60] sm:$0xff]
    %v256 = vld [vmem:[#allocation5 + $0x68] sm:$0xff]
    %v257 = vld [vmem:[#allocation5 + $0x70] sm:$0xff]
    %v258 = vld [vmem:[#allocation5 + $0x78] sm:$0xff]
    %v259 = vld [vmem:[#allocation5 + $0x80] sm:$0xff]
    %v260 = vld [vmem:[#allocation5 + $0x88] sm:$0xff]
    %v261 = vld [vmem:[#allocation5 + $0x90] sm:$0xff]
    %v262 = vld [vmem:[#allocation5 + $0x98] sm:$0xff]
    %v263 = vld [vmem:[#allocation5 + $0xa0] sm:$0xff]
    %v264 = vld [vmem:[#allocation5 + $0xa8] sm:$0xff]
    %v265 = vld [vmem:[#allocation5 + $0xb0] sm:$0xff]
    %v266 = vld [vmem:[#allocation5 + $0xb8] sm:$0xff]
    %v267 = vld [vmem:[#allocation5 + $0xc0] sm:$0xff]
    %v268 = vld [vmem:[#allocation5 + $0xc8] sm:$0xff]
    %v269 = vld [vmem:[#allocation5 + $0xd0] sm:$0xff]
    %v270 = vld [vmem:[#allocation5 + $0xd8] sm:$0xff]
    %v271 = vld [vmem:[#allocation5 + $0xe0] sm:$0xff]
    %v272 = vld [vmem:[#allocation5 + $0xe8] sm:$0xff]
    %v273 = vld [vmem:[#allocation5 + $0xf0] sm:$0xff]
    %v274 = vld [vmem:[#allocation5 + $0xf8] sm:$0xff]
    %v275 = vld [vmem:[#allocation5 + $0x100] sm:$0xff]
    %v276 = vld [vmem:[#allocation5 + $0x108] sm:$0xff]
    %v277 = vld [vmem:[#allocation5 + $0x110] sm:$0xff]
    %v278 = vld [vmem:[#allocation5 + $0x118] sm:$0xff]
    %v279 = vld [vmem:[#allocation5 + $0x120] sm:$0xff]
    %v280 = vld [vmem:[#allocation5 + $0x128] sm:$0xff]
    %v281 = vld [vmem:[#allocation5 + $0x130] sm:$0xff]
    %v282 = vld [vmem:[#allocation5 + $0x138] sm:$0xff]
    %v283 = vld [vmem:[#allocation5 + $0x140] sm:$0xff]
    %v284 = vld [vmem:[#allocation5 + $0x148] sm:$0xff]
    %v285 = vld [vmem:[#allocation5 + $0x150] sm:$0xff]
    %v286 = vld [vmem:[#allocation5 + $0x158] sm:$0xff]
    %v287 = vld [vmem:[#allocation5 + $0x160] sm:$0xff]
    %v288 = vld [vmem:[#allocation5 + $0x168] sm:$0xff]
    %v289 = vld [vmem:[#allocation5 + $0x170] sm:$0xff]
    %v290 = vld [vmem:[#allocation5 + $0x178] sm:$0xff]
    %v291 = vld [vmem:[#allocation5 + $0x180] sm:$0xff]
    %v292 = vld [vmem:[#allocation5 + $0x188] sm:$0xff]
    %v293 = vld [vmem:[#allocation5 + $0x190] sm:$0xff]
    %v294 = vld [vmem:[#allocation5 + $0x198] sm:$0xff]
    %v295 = vld [vmem:[#allocation5 + $0x1a0] sm:$0xff]
    %v296 = vld [vmem:[#allocation5 + $0x1a8] sm:$0xff]
    %v297 = vld [vmem:[#allocation5 + $0x1b0] sm:$0xff]
    %v298 = vld [vmem:[#allocation5 + $0x1b8] sm:$0xff]
    %v299 = vld [vmem:[#allocation5 + $0x1c0] sm:$0xff]
    %v300 = vld [vmem:[#allocation5 + $0x1c8] sm:$0xff]
    %v301 = vld [vmem:[#allocation5 + $0x1d0] sm:$0xff]
    %v302 = vld [vmem:[#allocation5 + $0x1d8] sm:$0xff]
    %v303 = vld [vmem:[#allocation5 + $0x1e0] sm:$0xff]
    %v304 = vld [vmem:[#allocation5 + $0x1e8] sm:$0xff]
    %v305 = vld [vmem:[#allocation5 + $0x1f0] sm:$0xff]
    %v306 = vld [vmem:[#allocation5 + $0x1f8] sm:$0xff]
    %v307 = vld [vmem:[%s6] sm:$0x3]
    %v309 = vlaneseq
    %v310 = vshrl.u32 %v309, 7
    %v311 = vsub.s32 0, %v310
    %v312 = vrot.slane %v307, %v311
    %v313 = vlaneseq
    %v314 = vshrl.u32 %v313, 7
    %v315 = vsub.s32 1, %v314
    %v316 = vrot.slane %v307, %v315
    %319 = vmatprep.subr.mxu0 %v274
    %320 = vmatpush1.msra.mxu0 %v273
    %321 = vmatprep.subr.mxu0 %v272
    %322 = vmatpush1.msra.mxu0 %v271
    %323 = vmatprep.subr.mxu0 %v270
    %324 = vmatpush1.msra.mxu0 %v269
    %325 = vmatprep.subr.mxu0 %v268
    %326 = vmatpush1.msra.mxu0 %v267
    %327 = vmatprep.subr.mxu0 %v266
    %328 = vmatpush1.msra.mxu0 %v265
    %329 = vmatprep.subr.mxu0 %v264
    %330 = vmatpush1.msra.mxu0 %v263
    %331 = vmatprep.subr.mxu0 %v262
    %332 = vmatpush1.msra.mxu0 %v261
    %333 = vmatprep.subr.mxu0 %v260
    %334 = vmatpush1.msra.mxu0 %v259
    %335 = vmatprep.subr.mxu0 %v258
    %336 = vmatpush1.msra.mxu0 %v257
    %337 = vmatprep.subr.mxu0 %v256
    %338 = vmatpush1.msra.mxu0 %v255
    %339 = vmatprep.subr.mxu0 %v254
    %340 = vmatpush1.msra.mxu0 %v253
    %341 = vmatprep.subr.mxu0 %v252
    %342 = vmatpush1.msra.mxu0 %v251
    %343 = vmatprep.subr.mxu0 %v250
    %344 = vmatpush1.msra.mxu0 %v249
    %345 = vmatprep.subr.mxu0 %v248
    %346 = vmatpush1.msra.mxu0 %v247
    %347 = vmatprep.subr.mxu0 %v246
    %348 = vmatpush1.msra.mxu0 %v245
    %349 = vmatprep.subr.mxu0 %v244
    %350 = vmatpush1.msra.mxu0 %v243
    %351 = vmatprep.subr.mxu0 %v306
    %352 = vmatpush2.msra.mxu0 %v305
    %353 = vmatprep.subr.mxu0 %v304
    %354 = vmatpush2.msra.mxu0 %v303
    %355 = vmatprep.subr.mxu0 %v302
    %356 = vmatpush2.msra.mxu0 %v301
    %357 = vmatprep.subr.mxu0 %v300
    %358 = vmatpush2.msra.mxu0 %v299
    %359 = vmatprep.subr.mxu0 %v298
    %360 = vmatpush2.msra.mxu0 %v297
    %361 = vmatprep.subr.mxu0 %v296
    %362 = vmatpush2.msra.mxu0 %v295
    %363 = vmatprep.subr.mxu0 %v294
    %364 = vmatpush2.msra.mxu0 %v293
    %365 = vmatprep.subr.mxu0 %v292
    %366 = vmatpush2.msra.mxu0 %v291
    %367 = vmatprep.subr.mxu0 %v290
    %368 = vmatpush2.msra.mxu0 %v289
    %369 = vmatprep.subr.mxu0 %v288
    %370 = vmatpush2.msra.mxu0 %v287
    %371 = vmatprep.subr.mxu0 %v286
    %372 = vmatpush2.msra.mxu0 %v285
    %373 = vmatprep.subr.mxu0 %v284
    %374 = vmatpush2.msra.mxu0 %v283
    %375 = vmatprep.subr.mxu0 %v282
    %376 = vmatpush2.msra.mxu0 %v281
    %377 = vmatprep.subr.mxu0 %v280
    %378 = vmatpush2.msra.mxu0 %v279
    %379 = vmatprep.subr.mxu0 %v278
    %380 = vmatpush2.msra.mxu0 %v277
    %381 = vmatprep.subr.mxu0 %v276
    %382 = vmatpush2.msra.mxu0 %v275
    %383 = vmatprep.mubr.f32.mxu0 %v241
    %384 = vmatmul.mubr.f32.gmra.mxu0 %v239
    %v385 = vpop.f32.mrf.mxu0
    %v386 = vadd.f32 %v312, %v385
    %v387 = vpop.f32.mrf.mxu0
    %v388 = vadd.f32 %v316, %v387
    %389 = vdwg.mxu0
    %v390 = vld [vmem:[%s7] sm:$0x3]
    %v392 = vlaneseq
    %v393 = vshrl.u32 %v392, 7
    %v394 = vsub.s32 0, %v393
    %v395 = vrot.slane %v390, %v394
    %v396 = vlaneseq
    %v397 = vshrl.u32 %v396, 7
    %v398 = vsub.s32 1, %v397
    %v399 = vrot.slane %v390, %v398
    %v402 = vmul.f32 %v386, %v395
    %v403 = vmul.f32 %v388, %v399
    %v404 = vadd.f32 %v402, %v403
    %405 = vadd.xlane.f32.xlu0 %v404
    %v406 = vpop.xlane.xlu0 %405
    %v407 = vld [vmem:[#allocation2] sm:$0x1]
    %v409 = vlaneseq
    %v410 = vshrl.u32 %v409, 7
    %v411 = vsub.s32 0, %v410
    %v412 = vrot.slane %v407, %v411
    %v414 = vadd.f32 %v406, %v412
    %vm415 = vcmask 7168
    %416 = vst.msk [vmem:[%s9] sm:$0xff] %vm415, %v414
    // Predicated region
    $region46: #{linear_regression_model_0.1} parent=1 // pred_check
      _
    $region47: #{linear_regression_model_0.1} parent=1 // pred_check_branch
      %418 = sbr.rel (0) target = $region49
    $region48: #{linear_regression_model_0.1} parent=1 // pred_region
      _
    $region49: #{linear_regression_model_0.1} parent=1 // pred_fallthru
      _
    // Predicated region
    $region50: #{linear_regression_model_0.1} parent=1 // pred_check
      _
    $region51: #{linear_regression_model_0.1} parent=1 // pred_check_branch
      %420 = sbr.rel (0) target = $region53
    $region52: #{linear_regression_model_0.1} parent=1 // pred_region
      _
    $region53: #{linear_regression_model_0.1} parent=1 // pred_fallthru
      _
    %421 = vsyncpa [#allocation4], 1
    %422 = vsyncpa [#allocation6], 1

</llo_original>
